<compile_context>
chip_gen: v7x
topology: tpu7x:2x2x1
jax: 0.10.0
libtpu: 0.0.40
codegen_flags: <defaults>
</compile_context>

<pallas_src>
import functools
import math

import jax
import jax.numpy as jnp
import numpy as np
from jax.experimental import pallas as pl
from jax.experimental.pallas import tpu as pltpu


# ----------------------------- model config -----------------------------
INPUT_SIZE = 64          # small analogue of 784 (flattened 1x8x8 image)
HIDDEN = (32, 16)        # small analogue of (256, 32)
LATENT = 8               # small analogue of 10
BATCH = 256              # rows per call (amortizes fixed pallas_call/DMA cost)
LANE = 128               # lane width all weight blocks are zero-padded to

# Packed parameter slab layout (all row offsets 8-aligned, cols zero-padded
# to LANE).  Only the rows that actually carry weights are stored.
ROW_W1 = 0                         # (INPUT_SIZE, LANE)  cols[:32]        = W1
ROW_B1 = ROW_W1 + INPUT_SIZE       # 64  (1, LANE)       cols[:32]        = b1
ROW_W2 = ROW_B1 + 8                # 72  (HIDDEN[0], LANE) cols[:16]      = W2
ROW_B2 = ROW_W2 + HIDDEN[0]        # 104 (1, LANE)       cols[:16]        = b2
ROW_WMV = ROW_B2 + 8               # 112 (HIDDEN[1], LANE) [:8]=Wm [8:16]=Wv
ROW_BMV = ROW_WMV + HIDDEN[1]      # 128 (1, LANE)       [:8]=bm  [8:16]=bv
SLAB_ROWS = ROW_BMV + 8            # 136 (multiple of 8) -> ~68 KiB f32


# ------------------------------- kernel ---------------------------------
def encoder_kernel(x_ref, p_ref, mean_ref, logvar_ref):
    x = x_ref[...]                                    # (TB, INPUT_SIZE)

    # Static sub-views of the packed parameter slab (zero-cost ref slices).
    w1 = p_ref[ROW_W1:ROW_W1 + INPUT_SIZE, :]         # (64, 128)
    b1 = p_ref[ROW_B1:ROW_B1 + 1, :]                  # (1, 128)
    w2 = p_ref[ROW_W2:ROW_W2 + HIDDEN[0], :]          # (32, 128)
    b2 = p_ref[ROW_B2:ROW_B2 + 1, :]                  # (1, 128)
    wmv = p_ref[ROW_WMV:ROW_WMV + HIDDEN[1], :]       # (16, 128) fused mean|logvar
    bmv = p_ref[ROW_BMV:ROW_BMV + 1, :]               # (1, 128)

    # Hidden layers (ReLU).  Zero-padded weight cols + zero bias lanes keep
    # the padded lanes exactly zero, so contracting against the lane-0
    # slices below reproduces the unpadded math exactly.
    h1 = jnp.maximum(
        jnp.dot(x, w1, preferred_element_type=jnp.float32) + b1, 0.0)
    h2 = jnp.maximum(
        jnp.dot(h1[:, :HIDDEN[0]], w2, preferred_element_type=jnp.float32) + b2,
        0.0)

    # Fused fc_mean / fc_logvar head: one MXU pass, then split the result.
    zmv = jnp.dot(h2[:, :HIDDEN[1]], wmv, preferred_element_type=jnp.float32) + bmv

    mean_ref[...] = zmv[:, :LATENT]
    logvar_ref[...] = zmv[:, LATENT:2 * LATENT]


# ------------------------------- wrapper ---------------------------------
@functools.partial(jax.jit, static_argnames=("tiles",))
def encoder_forward(x_nchw, param_slab, *, tiles=1):
    n = math.prod(x_nchw.shape) // INPUT_SIZE          # x.view(-1, input_size)
    xf = x_nchw.reshape(n, INPUT_SIZE).astype(jnp.float32)
    tb = n // tiles                                    # rows per grid step

    z_mean, z_logvar = pl.pallas_call(
        encoder_kernel,
        out_shape=(
            jax.ShapeDtypeStruct((n, LATENT), jnp.float32),
            jax.ShapeDtypeStruct((n, LATENT), jnp.float32),
        ),
        grid=(tiles,),
        in_specs=[
            pl.BlockSpec((tb, INPUT_SIZE), lambda i: (i, 0)),      # batch tile
            pl.BlockSpec((SLAB_ROWS, LANE), lambda i: (0, 0)),     # params, resident
        ],
        out_specs=(
            pl.BlockSpec((tb, LATENT), lambda i: (i, 0)),          # z_mean
            pl.BlockSpec((tb, LATENT), lambda i: (i, 0)),          # z_logvar
        ),
        compiler_params=pltpu.CompilerParams(
            dimension_semantics=("parallel",)),
    )(xf, param_slab)
    return z_mean, z_logvar


def pick_parallel_tiles(batch_rows):
    """grid=(1,) on single-TC chips (v5e/v6e); >=2 parallel tiles on multi-TC
    chips (v7x) so the 'parallel' axis shards the batch across cores."""
    cores = 1
    try:
        dev = jax.devices()[0]
        for attr in ("num_cores", "core_count"):
            v = getattr(dev, attr, None)
            if isinstance(v, int) and v > 0:
                cores = v
                break
    except Exception:
        cores = 1
    tiles = max(1, cores)
    # Keep tiling legal: rows must split evenly and each tile be 8-row aligned.
    while tiles > 1 and (batch_rows % tiles != 0 or (batch_rows // tiles) % 8 != 0):
        tiles -= 1
    return tiles


# ------------------------- deterministic params ---------------------------
def init_params(key):
    # Linear weights stored transposed vs PyTorch, i.e. as (in, out).
    def lin(k, fan_in, fan_out, scale=0.1):
        kw, kb = jax.random.split(k)
        w = scale * jax.random.normal(kw, (fan_in, fan_out), jnp.float32)
        bvec = scale * jax.random.normal(kb, (fan_out,), jnp.float32)
        return w, bvec

    ks = jax.random.split(key, 4)
    w1, b1 = lin(ks[0], INPUT_SIZE, HIDDEN[0])
    w2, b2 = lin(ks[1], HIDDEN[0], HIDDEN[1])
    wm, bm = lin(ks[2], HIDDEN[1], LATENT)
    wv, bv = lin(ks[3], HIDDEN[1], LATENT)
    return (w1, b1, w2, b2, wm, bm, wv, bv)


def pack_params(params):
    """One-time parameter packing (hoisted out of the forward hot path)."""
    w1, b1, w2, b2, wm, bm, wv, bv = params
    slab = np.zeros((SLAB_ROWS, LANE), np.float32)
    slab[ROW_W1:ROW_W1 + INPUT_SIZE, :HIDDEN[0]] = np.asarray(w1)
    slab[ROW_B1, :HIDDEN[0]] = np.asarray(b1)
    slab[ROW_W2:ROW_W2 + HIDDEN[0], :HIDDEN[1]] = np.asarray(w2)
    slab[ROW_B2, :HIDDEN[1]] = np.asarray(b2)
    slab[ROW_WMV:ROW_WMV + HIDDEN[1], :LATENT] = np.asarray(wm)
    slab[ROW_WMV:ROW_WMV + HIDDEN[1], LATENT:2 * LATENT] = np.asarray(wv)
    slab[ROW_BMV, :LATENT] = np.asarray(bm)
    slab[ROW_BMV, LATENT:2 * LATENT] = np.asarray(bv)
    return jnp.asarray(slab)


# --------------------------- pure-JAX reference ----------------------------
def reference_forward(x_nchw, params):
    w1, b1, w2, b2, wm, bm, wv, bv = params
    xf = x_nchw.reshape(-1, INPUT_SIZE).astype(jnp.float32)
    h = jnp.maximum(xf @ w1 + b1, 0.0)
    h = jnp.maximum(h @ w2 + b2, 0.0)
    return h @ wm + bm, h @ wv + bv


# --------------------------------- main -----------------------------------
if __name__ == "__main__":
    key = jax.random.PRNGKey(0)
    k_x, k_p = jax.random.split(key)

    # NCHW input, flattened inside the wrapper (B*1*8*8 == INPUT_SIZE per item).
    x = jax.random.uniform(k_x, (BATCH, 1, 8, 8), jnp.float32)
    params = init_params(k_p)
    param_slab = pack_params(params)     # built once, reused every call

    tiles = pick_parallel_tiles(BATCH)
    z_mean, z_logvar = encoder_forward(x, param_slab, tiles=tiles)
    jax.block_until_ready((z_mean, z_logvar))

    zm_ref, zlv_ref = reference_forward(x, params)
    assert z_mean.shape == (BATCH, LATENT) and z_logvar.shape == (BATCH, LATENT)
    assert np.allclose(np.asarray(z_mean), np.asarray(zm_ref), rtol=2e-5, atol=2e-5)
    assert np.allclose(np.asarray(z_logvar), np.asarray(zlv_ref), rtol=2e-5, atol=2e-5)

    print("KERNEL_OK")
</pallas_src>

<mosaic_0001>
module attributes {stable_mosaic.version = 11 : i64} {
  func.func @encoder_kernel(%arg0: i32, %arg1: memref<256x64xf32, #tpu.memory_space<vmem>>, %arg2: memref<136x128xf32, #tpu.memory_space<vmem>>, %arg3: memref<256x8xf32, #tpu.memory_space<vmem>>, %arg4: memref<256x8xf32, #tpu.memory_space<vmem>>) attributes {dimension_semantics = [#tpu.dimension_semantics<parallel>], iteration_bounds = array<i64: 1>, scalar_prefetch = 0 : i64, scratch_operands = 0 : i64, tpu.core_type = #tpu.core_type<tc>, window_params = [{transform_indices = @transform_0, window_bounds = array<i64: 256, 64>}, {pipeline_mode = #tpu.pipeline_mode<synchronous>, transform_indices = @transform_1, window_bounds = array<i64: 136, 128>}, {transform_indices = @transform_2, window_bounds = array<i64: 256, 8>}, {transform_indices = @transform_3, window_bounds = array<i64: 256, 8>}]} {
    %c0 = arith.constant 0 : index
    %c0_0 = arith.constant 0 : index
    %0 = vector.load %arg1[%c0, %c0_0] : memref<256x64xf32, #tpu.memory_space<vmem>>, vector<256x64xf32>
    %c0_1 = arith.constant 0 : index
    %c0_2 = arith.constant 0 : index
    %1 = vector.load %arg2[%c0_1, %c0_2] : memref<136x128xf32, #tpu.memory_space<vmem>>, vector<64x128xf32>
    %c64 = arith.constant 64 : index
    %c0_3 = arith.constant 0 : index
    %2 = vector.load %arg2[%c64, %c0_3] : memref<136x128xf32, #tpu.memory_space<vmem>>, vector<1x128xf32>
    %c72 = arith.constant 72 : index
    %c0_4 = arith.constant 0 : index
    %3 = vector.load %arg2[%c72, %c0_4] : memref<136x128xf32, #tpu.memory_space<vmem>>, vector<32x128xf32>
    %c104 = arith.constant 104 : index
    %c0_5 = arith.constant 0 : index
    %4 = vector.load %arg2[%c104, %c0_5] : memref<136x128xf32, #tpu.memory_space<vmem>>, vector<1x128xf32>
    %c112 = arith.constant 112 : index
    %c0_6 = arith.constant 0 : index
    %5 = vector.load %arg2[%c112, %c0_6] : memref<136x128xf32, #tpu.memory_space<vmem>>, vector<16x128xf32>
    %c128 = arith.constant 128 : index
    %c0_7 = arith.constant 0 : index
    %6 = vector.load %arg2[%c128, %c0_7] : memref<136x128xf32, #tpu.memory_space<vmem>>, vector<1x128xf32>
    %cst = arith.constant dense<0.000000e+00> : vector<256x128xf32>
    %7 = tpu.matmul %0, %1, %cst {dimension_numbers = #tpu.dot_dimension_numbers<[1], [0], [0], [1], [0, 0, 1, 1], [], []>} : vector<256x64xf32>, vector<64x128xf32>, vector<256x128xf32> -> vector<256x128xf32>
    %8 = vector.broadcast %2 : vector<1x128xf32> to vector<256x128xf32>
    %9 = arith.addf %7, %8 : vector<256x128xf32>
    %cst_8 = arith.constant 0.000000e+00 : f32
    %10 = vector.broadcast %cst_8 : f32 to vector<256x128xf32>
    %11 = arith.maximumf %9, %10 : vector<256x128xf32>
    %12 = vector.extract_strided_slice %11 {offsets = [0, 0], sizes = [256, 32], strides = [1, 1]} : vector<256x128xf32> to vector<256x32xf32>
    %cst_9 = arith.constant dense<0.000000e+00> : vector<256x128xf32>
    %13 = tpu.matmul %12, %3, %cst_9 {dimension_numbers = #tpu.dot_dimension_numbers<[1], [0], [0], [1], [0, 0, 1, 1], [], []>} : vector<256x32xf32>, vector<32x128xf32>, vector<256x128xf32> -> vector<256x128xf32>
    %14 = vector.broadcast %4 : vector<1x128xf32> to vector<256x128xf32>
    %15 = arith.addf %13, %14 : vector<256x128xf32>
    %cst_10 = arith.constant 0.000000e+00 : f32
    %16 = vector.broadcast %cst_10 : f32 to vector<256x128xf32>
    %17 = arith.maximumf %15, %16 : vector<256x128xf32>
    %18 = vector.extract_strided_slice %17 {offsets = [0, 0], sizes = [256, 16], strides = [1, 1]} : vector<256x128xf32> to vector<256x16xf32>
    %cst_11 = arith.constant dense<0.000000e+00> : vector<256x128xf32>
    %19 = tpu.matmul %18, %5, %cst_11 {dimension_numbers = #tpu.dot_dimension_numbers<[1], [0], [0], [1], [0, 0, 1, 1], [], []>} : vector<256x16xf32>, vector<16x128xf32>, vector<256x128xf32> -> vector<256x128xf32>
    %20 = vector.broadcast %6 : vector<1x128xf32> to vector<256x128xf32>
    %21 = arith.addf %19, %20 : vector<256x128xf32>
    %22 = vector.extract_strided_slice %21 {offsets = [0, 0], sizes = [256, 8], strides = [1, 1]} : vector<256x128xf32> to vector<256x8xf32>
    %c0_12 = arith.constant 0 : index
    %c0_13 = arith.constant 0 : index
    %23 = vector.load %arg3[%c0_12, %c0_13] : memref<256x8xf32, #tpu.memory_space<vmem>>, vector<256x8xf32>
    tpu.vector_store %arg3[%c0_12, %c0_13], %22 {strides = array<i32>} : memref<256x8xf32, #tpu.memory_space<vmem>>, vector<256x8xf32>,
    %24 = vector.extract_strided_slice %21 {offsets = [0, 8], sizes = [256, 8], strides = [1, 1]} : vector<256x128xf32> to vector<256x8xf32>
    %c0_14 = arith.constant 0 : index
    %c0_15 = arith.constant 0 : index
    %25 = vector.load %arg4[%c0_14, %c0_15] : memref<256x8xf32, #tpu.memory_space<vmem>>, vector<256x8xf32>
    tpu.vector_store %arg4[%c0_14, %c0_15], %24 {strides = array<i32>} : memref<256x8xf32, #tpu.memory_space<vmem>>, vector<256x8xf32>,
    return
  }
  func.func @transform_0(%arg0: i32) -> (i32, i32) {
    %c0_i32 = arith.constant 0 : i32
    %c0_i32_0 = arith.constant 0 : i32
    return %arg0, %c0_i32 : i32, i32
  }
  func.func @transform_1(%arg0: i32) -> (i32, i32) {
    %c0_i32 = arith.constant 0 : i32
    %c0_i32_0 = arith.constant 0 : i32
    %c0_i32_1 = arith.constant 0 : i32
    return %c0_i32, %c0_i32_0 : i32, i32
  }
  func.func @transform_2(%arg0: i32) -> (i32, i32) {
    %c0_i32 = arith.constant 0 : i32
    %c0_i32_0 = arith.constant 0 : i32
    return %arg0, %c0_i32 : i32, i32
  }
  func.func @transform_3(%arg0: i32) -> (i32, i32) {
    %c0_i32 = arith.constant 0 : i32
    %c0_i32_0 = arith.constant 0 : i32
    return %arg0, %c0_i32 : i32, i32
  }
}

</mosaic_0001>

<llo_original>
// kernel: encoder_forward.1
$region0: #{encoder_forward.1}
  #allocation0 [shape = 'u32[]', space=smem, size = 0x4, offset = 0x4, fixed_abs, tag = 'smem constant byte address 0x4 - core index']
  #allocation1 [shape = 'u32[144,128]{1,0:T(1,128)}', space=vmem, size = 0x12000, scoped, tag = 'internal scratch']
  %s0 = inlined_call_operand.vmem [shape: f32[256,64], index: 0, kind: input, shape index: {}]
  %s1 = inlined_call_operand.vmem [shape: f32[136,128], index: 1, kind: input, shape index: {}]
  %s2 = inlined_call_operand.vmem [shape: f32[256,8], index: 2, kind: output, shape index: {0}]
  %s3 = inlined_call_operand.vmem [shape: f32[256,8], index: 3, kind: output, shape index: {1}]
  %4 = xla_tuple %s2, %s3
  %s5 = sld [smem:[#allocation0]]
  $region26: #{encoder_forward.1} parent=0
    _
  %s7 = ssub.s32 1, %s5
  %s8 = scalar_select 0, %s7, %s5
  // Predicated region
  $region2: #{encoder_forward.1} parent=0 // pred_check
    _
  $region3: #{encoder_forward.1} parent=0 // pred_check_branch
    %10 = sbr.rel (0) target = $region5
  $region4: #{encoder_forward.1} parent=0 // pred_region
    _
  $region5: #{encoder_forward.1} parent=0 // pred_fallthru
    _
  // Predicated region
  $region6: #{encoder_forward.1} parent=0 // pred_check
    _
  $region7: #{encoder_forward.1} parent=0 // pred_check_branch
    %12 = sbr.rel (0) target = $region9
  $region8: #{encoder_forward.1} parent=0 // pred_region
    _
  $region9: #{encoder_forward.1} parent=0 // pred_fallthru
    _
  %v13 = vld [vmem:[%s0] sm:$0xff]
  %v14 = vld [vmem:[%s0 + $0x8] sm:$0xff]
  %v15 = vld [vmem:[%s0 + $0x10] sm:$0xff]
  %v16 = vld [vmem:[%s0 + $0x18] sm:$0xff]
  %v17 = vld [vmem:[%s0 + $0x20] sm:$0xff]
  %v18 = vld [vmem:[%s0 + $0x28] sm:$0xff]
  %v19 = vld [vmem:[%s0 + $0x30] sm:$0xff]
  %v20 = vld [vmem:[%s0 + $0x38] sm:$0xff]
  %v21 = vld [vmem:[%s0 + $0x40] sm:$0xff]
  %v22 = vld [vmem:[%s0 + $0x48] sm:$0xff]
  %v23 = vld [vmem:[%s0 + $0x50] sm:$0xff]
  %v24 = vld [vmem:[%s0 + $0x58] sm:$0xff]
  %v25 = vld [vmem:[%s0 + $0x60] sm:$0xff]
  %v26 = vld [vmem:[%s0 + $0x68] sm:$0xff]
  %v27 = vld [vmem:[%s0 + $0x70] sm:$0xff]
  %v28 = vld [vmem:[%s0 + $0x78] sm:$0xff]
  %v29 = vld [vmem:[%s0 + $0x80] sm:$0xff]
  %v30 = vld [vmem:[%s0 + $0x88] sm:$0xff]
  %v31 = vld [vmem:[%s0 + $0x90] sm:$0xff]
  %v32 = vld [vmem:[%s0 + $0x98] sm:$0xff]
  %v33 = vld [vmem:[%s0 + $0xa0] sm:$0xff]
  %v34 = vld [vmem:[%s0 + $0xa8] sm:$0xff]
  %v35 = vld [vmem:[%s0 + $0xb0] sm:$0xff]
  %v36 = vld [vmem:[%s0 + $0xb8] sm:$0xff]
  %v37 = vld [vmem:[%s0 + $0xc0] sm:$0xff]
  %v38 = vld [vmem:[%s0 + $0xc8] sm:$0xff]
  %v39 = vld [vmem:[%s0 + $0xd0] sm:$0xff]
  %v40 = vld [vmem:[%s0 + $0xd8] sm:$0xff]
  %v41 = vld [vmem:[%s0 + $0xe0] sm:$0xff]
  %v42 = vld [vmem:[%s0 + $0xe8] sm:$0xff]
  %v43 = vld [vmem:[%s0 + $0xf0] sm:$0xff]
  %v44 = vld [vmem:[%s0 + $0xf8] sm:$0xff]
  %v45 = vld [vmem:[%s1] sm:$0xff]
  %v46 = vld [vmem:[%s1 + $0x8] sm:$0xff]
  %v47 = vld [vmem:[%s1 + $0x10] sm:$0xff]
  %v48 = vld [vmem:[%s1 + $0x18] sm:$0xff]
  %v49 = vld [vmem:[%s1 + $0x20] sm:$0xff]
  %v50 = vld [vmem:[%s1 + $0x28] sm:$0xff]
  %v51 = vld [vmem:[%s1 + $0x30] sm:$0xff]
  %v52 = vld [vmem:[%s1 + $0x38] sm:$0xff]
  %v53 = vld [vmem:[%s1 + $0x40] sm:$0x1]
  %v54 = vld [vmem:[%s1 + $0x48] sm:$0xff]
  %v55 = vld [vmem:[%s1 + $0x50] sm:$0xff]
  %v56 = vld [vmem:[%s1 + $0x58] sm:$0xff]
  %v57 = vld [vmem:[%s1 + $0x60] sm:$0xff]
  %v58 = vld [vmem:[%s1 + $0x68] sm:$0x1]
  %v59 = vld [vmem:[%s1 + $0x70] sm:$0xff]
  %v60 = vld [vmem:[%s1 + $0x78] sm:$0xff]
  %v61 = vld [vmem:[%s1 + $0x80] sm:$0x1]
  %v62 = vlaneseq
  %v63 = vshrl.u32 %v62, 7
  %v64 = vsub.s32 0, %v63
  %v65 = vrot.slane %v53, %v64
  %vm66 = vcmask 523264
  %v68 = vsel %vm66, %v13, 0
  %v71 = vsel %vm66, %v14, 0
  %v74 = vsel %vm66, %v15, 0
  %v77 = vsel %vm66, %v16, 0
  %v80 = vsel %vm66, %v17, 0
  %v83 = vsel %vm66, %v18, 0
  %v86 = vsel %vm66, %v19, 0
  %v89 = vsel %vm66, %v20, 0
  %v92 = vsel %vm66, %v21, 0
  %v95 = vsel %vm66, %v22, 0
  %v98 = vsel %vm66, %v23, 0
  %v101 = vsel %vm66, %v24, 0
  %v104 = vsel %vm66, %v25, 0
  %v107 = vsel %vm66, %v26, 0
  %v110 = vsel %vm66, %v27, 0
  %v113 = vsel %vm66, %v28, 0
  %v116 = vsel %vm66, %v29, 0
  %v119 = vsel %vm66, %v30, 0
  %v122 = vsel %vm66, %v31, 0
  %v125 = vsel %vm66, %v32, 0
  %v128 = vsel %vm66, %v33, 0
  %v131 = vsel %vm66, %v34, 0
  %v134 = vsel %vm66, %v35, 0
  %v137 = vsel %vm66, %v36, 0
  %v140 = vsel %vm66, %v37, 0
  %v143 = vsel %vm66, %v38, 0
  %v146 = vsel %vm66, %v39, 0
  %v149 = vsel %vm66, %v40, 0
  %v152 = vsel %vm66, %v41, 0
  %v155 = vsel %vm66, %v42, 0
  %v158 = vsel %vm66, %v43, 0
  %v161 = vsel %vm66, %v44, 0
  %163 = vmatprep.subr.mxu0 0.0
  %164 = vmatpush1.msra.mxu0 %v45
  %165 = vmatprep.subr.mxu0 0.0
  %166 = vmatpush1.msra.mxu0 %v46
  %167 = vmatprep.subr.mxu0 0.0
  %168 = vmatpush1.msra.mxu0 %v47
  %169 = vmatprep.subr.mxu0 0.0
  %170 = vmatpush1.msra.mxu0 %v48
  %171 = vmatprep.subr.mxu0 0.0
  %172 = vmatpush1.msra.mxu0 %v49
  %173 = vmatprep.subr.mxu0 0.0
  %174 = vmatpush1.msra.mxu0 %v50
  %175 = vmatprep.subr.mxu0 0.0
  %176 = vmatpush1.msra.mxu0 %v51
  %177 = vmatprep.subr.mxu0 0.0
  %178 = vmatpush1.msra.mxu0 %v52
  %179 = vmatprep.subr.mxu0 0.0
  %180 = vmatpush1.msra.mxu0 0.0
  %181 = vmatprep.subr.mxu0 0.0
  %182 = vmatpush1.msra.mxu0 0.0
  %183 = vmatprep.subr.mxu0 0.0
  %184 = vmatpush1.msra.mxu0 0.0
  %185 = vmatprep.subr.mxu0 0.0
  %186 = vmatpush1.msra.mxu0 0.0
  %187 = vmatprep.subr.mxu0 0.0
  %188 = vmatpush1.msra.mxu0 0.0
  %189 = vmatprep.subr.mxu0 0.0
  %190 = vmatpush1.msra.mxu0 0.0
  %191 = vmatprep.subr.mxu0 0.0
  %192 = vmatpush1.msra.mxu0 0.0
  %193 = vmatprep.subr.mxu0 0.0
  %194 = vmatpush1.msra.mxu0 0.0
  %195 = vmatprep.subr.mxu0 0.0
  %196 = vmatpush1.msra.mxu0 0.0
  %197 = vmatprep.subr.mxu0 0.0
  %198 = vmatpush1.msra.mxu0 0.0
  %199 = vmatprep.subr.mxu0 0.0
  %200 = vmatpush1.msra.mxu0 0.0
  %201 = vmatprep.subr.mxu0 0.0
  %202 = vmatpush1.msra.mxu0 0.0
  %203 = vmatprep.subr.mxu0 0.0
  %204 = vmatpush1.msra.mxu0 0.0
  %205 = vmatprep.subr.mxu0 0.0
  %206 = vmatpush1.msra.mxu0 0.0
  %207 = vmatprep.subr.mxu0 0.0
  %208 = vmatpush1.msra.mxu0 0.0
  %209 = vmatprep.subr.mxu0 0.0
  %210 = vmatpush1.msra.mxu0 0.0
  %211 = vmatprep.subr.mxu0 0.0
  %212 = vmatpush1.msra.mxu0 0.0
  %213 = vmatprep.subr.mxu0 0.0
  %214 = vmatpush1.msra.mxu0 0.0
  %215 = vmatprep.subr.mxu0 0.0
  %216 = vmatpush1.msra.mxu0 0.0
  %217 = vmatprep.subr.mxu0 0.0
  %218 = vmatpush1.msra.mxu0 0.0
  %219 = vmatprep.subr.mxu0 0.0
  %220 = vmatpush1.msra.mxu0 0.0
  %221 = vmatprep.subr.mxu0 0.0
  %222 = vmatpush1.msra.mxu0 0.0
  %223 = vmatprep.subr.mxu0 0.0
  %224 = vmatpush1.msra.mxu0 0.0
  %225 = vmatprep.subr.mxu0 0.0
  %226 = vmatpush1.msra.mxu0 0.0
  %227 = vmatprep.mubr.f32.mxu0 0.0
  %228 = vmatmul.mubr.f32.gmra.mrb[0].mxu0 %v68
  %v229 = vpop.f32.mrb[0].mxu0
  %v230 = vadd.f32 %v65, %v229
  %v231 = vpop.f32.mrb[0].mxu0
  %232 = vmatprep.mubr.f32.mxu0 0.0
  %233 = vmatmul.mubr.f32.gmra.mrb[0].mxu0 %v71
  %v234 = vpop.f32.mrb[0].mxu0
  %v235 = vadd.f32 %v65, %v234
  %v236 = vpop.f32.mrb[0].mxu0
  %237 = vmatprep.mubr.f32.mxu0 0.0
  %238 = vmatmul.mubr.f32.gmra.mrb[0].mxu0 %v74
  %v239 = vpop.f32.mrb[0].mxu0
  %v240 = vadd.f32 %v65, %v239
  %v241 = vpop.f32.mrb[0].mxu0
  %242 = vmatprep.mubr.f32.mxu0 0.0
  %243 = vmatmul.mubr.f32.gmra.mrb[0].mxu0 %v77
  %v244 = vpop.f32.mrb[0].mxu0
  %v245 = vadd.f32 %v65, %v244
  %v246 = vpop.f32.mrb[0].mxu0
  %247 = vmatprep.mubr.f32.mxu0 0.0
  %248 = vmatmul.mubr.f32.gmra.mrb[0].mxu0 %v80
  %v249 = vpop.f32.mrb[0].mxu0
  %v250 = vadd.f32 %v65, %v249
  %v251 = vpop.f32.mrb[0].mxu0
  %252 = vmatprep.mubr.f32.mxu0 0.0
  %253 = vmatmul.mubr.f32.gmra.mrb[0].mxu0 %v83
  %v254 = vpop.f32.mrb[0].mxu0
  %v255 = vadd.f32 %v65, %v254
  %v256 = vpop.f32.mrb[0].mxu0
  %257 = vmatprep.mubr.f32.mxu0 0.0
  %258 = vmatmul.mubr.f32.gmra.mrb[0].mxu0 %v86
  %v259 = vpop.f32.mrb[0].mxu0
  %v260 = vadd.f32 %v65, %v259
  %v261 = vpop.f32.mrb[0].mxu0
  %262 = vmatprep.mubr.f32.mxu0 0.0
  %263 = vmatmul.mubr.f32.gmra.mrb[0].mxu0 %v89
  %v264 = vpop.f32.mrb[0].mxu0
  %v265 = vadd.f32 %v65, %v264
  %v266 = vpop.f32.mrb[0].mxu0
  %267 = vmatprep.mubr.f32.mxu0 0.0
  %268 = vmatmul.mubr.f32.gmra.mrb[0].mxu0 %v92
  %v269 = vpop.f32.mrb[0].mxu0
  %v270 = vadd.f32 %v65, %v269
  %v271 = vpop.f32.mrb[0].mxu0
  %272 = vmatprep.mubr.f32.mxu0 0.0
  %273 = vmatmul.mubr.f32.gmra.mrb[0].mxu0 %v95
  %v274 = vpop.f32.mrb[0].mxu0
  %v275 = vadd.f32 %v65, %v274
  %v276 = vpop.f32.mrb[0].mxu0
  %277 = vmatprep.mubr.f32.mxu0 0.0
  %278 = vmatmul.mubr.f32.gmra.mrb[0].mxu0 %v98
  %v279 = vpop.f32.mrb[0].mxu0
  %v280 = vadd.f32 %v65, %v279
  %v281 = vpop.f32.mrb[0].mxu0
  %282 = vmatprep.mubr.f32.mxu0 0.0
  %283 = vmatmul.mubr.f32.gmra.mrb[0].mxu0 %v101
  %v284 = vpop.f32.mrb[0].mxu0
  %v285 = vadd.f32 %v65, %v284
  %v286 = vpop.f32.mrb[0].mxu0
  %287 = vmatprep.mubr.f32.mxu0 0.0
  %288 = vmatmul.mubr.f32.gmra.mrb[0].mxu0 %v104
  %v289 = vpop.f32.mrb[0].mxu0
  %v290 = vadd.f32 %v65, %v289
  %v291 = vpop.f32.mrb[0].mxu0
  %292 = vmatprep.mubr.f32.mxu0 0.0
  %293 = vmatmul.mubr.f32.gmra.mrb[0].mxu0 %v107
  %v294 = vpop.f32.mrb[0].mxu0
  %v295 = vadd.f32 %v65, %v294
  %v296 = vpop.f32.mrb[0].mxu0
  %297 = vmatprep.mubr.f32.mxu0 0.0
  %298 = vmatmul.mubr.f32.gmra.mrb[0].mxu0 %v110
  %v299 = vpop.f32.mrb[0].mxu0
  %v300 = vadd.f32 %v65, %v299
  %v301 = vpop.f32.mrb[0].mxu0
  %302 = vmatprep.mubr.f32.mxu0 0.0
  %303 = vmatmul.mubr.f32.gmra.mrb[0].mxu0 %v113
  %v304 = vpop.f32.mrb[0].mxu0
  %v305 = vadd.f32 %v65, %v304
  %v306 = vpop.f32.mrb[0].mxu0
  %307 = vmatprep.mubr.f32.mxu0 0.0
  %308 = vmatmul.mubr.f32.gmra.mrb[0].mxu0 %v116
  %v309 = vpop.f32.mrb[0].mxu0
  %v310 = vadd.f32 %v65, %v309
  %v311 = vpop.f32.mrb[0].mxu0
  %312 = vmatprep.mubr.f32.mxu0 0.0
  %313 = vmatmul.mubr.f32.gmra.mrb[0].mxu0 %v119
  %v314 = vpop.f32.mrb[0].mxu0
  %v315 = vadd.f32 %v65, %v314
  %v316 = vpop.f32.mrb[0].mxu0
  %317 = vmatprep.mubr.f32.mxu0 0.0
  %318 = vmatmul.mubr.f32.gmra.mrb[0].mxu0 %v122
  %v319 = vpop.f32.mrb[0].mxu0
  %v320 = vadd.f32 %v65, %v319
  %v321 = vpop.f32.mrb[0].mxu0
  %322 = vmatprep.mubr.f32.mxu0 0.0
  %323 = vmatmul.mubr.f32.gmra.mrb[0].mxu0 %v125
  %v324 = vpop.f32.mrb[0].mxu0
  %v325 = vadd.f32 %v65, %v324
  %v326 = vpop.f32.mrb[0].mxu0
  %327 = vmatprep.mubr.f32.mxu0 0.0
  %328 = vmatmul.mubr.f32.gmra.mrb[0].mxu0 %v128
  %v329 = vpop.f32.mrb[0].mxu0
  %v330 = vadd.f32 %v65, %v329
  %v331 = vpop.f32.mrb[0].mxu0
  %332 = vmatprep.mubr.f32.mxu0 0.0
  %333 = vmatmul.mubr.f32.gmra.mrb[0].mxu0 %v131
  %v334 = vpop.f32.mrb[0].mxu0
  %v335 = vadd.f32 %v65, %v334
  %v336 = vpop.f32.mrb[0].mxu0
  %337 = vmatprep.mubr.f32.mxu0 0.0
  %338 = vmatmul.mubr.f32.gmra.mrb[0].mxu0 %v134
  %v339 = vpop.f32.mrb[0].mxu0
  %v340 = vadd.f32 %v65, %v339
  %v341 = vpop.f32.mrb[0].mxu0
  %342 = vmatprep.mubr.f32.mxu0 0.0
  %343 = vmatmul.mubr.f32.gmra.mrb[0].mxu0 %v137
  %v344 = vpop.f32.mrb[0].mxu0
  %v345 = vadd.f32 %v65, %v344
  %v346 = vpop.f32.mrb[0].mxu0
  %347 = vmatprep.mubr.f32.mxu0 0.0
  %348 = vmatmul.mubr.f32.gmra.mrb[0].mxu0 %v140
  %v349 = vpop.f32.mrb[0].mxu0
  %v350 = vadd.f32 %v65, %v349
  %v351 = vpop.f32.mrb[0].mxu0
  %352 = vmatprep.mubr.f32.mxu0 0.0
  %353 = vmatmul.mubr.f32.gmra.mrb[0].mxu0 %v143
  %v354 = vpop.f32.mrb[0].mxu0
  %v355 = vadd.f32 %v65, %v354
  %v356 = vpop.f32.mrb[0].mxu0
  %357 = vmatprep.mubr.f32.mxu0 0.0
  %358 = vmatmul.mubr.f32.gmra.mrb[0].mxu0 %v146
  %v359 = vpop.f32.mrb[0].mxu0
  %v360 = vadd.f32 %v65, %v359
  %v361 = vpop.f32.mrb[0].mxu0
  %362 = vmatprep.mubr.f32.mxu0 0.0
  %363 = vmatmul.mubr.f32.gmra.mrb[0].mxu0 %v149
  %v364 = vpop.f32.mrb[0].mxu0
  %v365 = vadd.f32 %v65, %v364
  %v366 = vpop.f32.mrb[0].mxu0
  %367 = vmatprep.mubr.f32.mxu0 0.0
  %368 = vmatmul.mubr.f32.gmra.mrb[0].mxu0 %v152
  %v369 = vpop.f32.mrb[0].mxu0
  %v370 = vadd.f32 %v65, %v369
  %v371 = vpop.f32.mrb[0].mxu0
  %372 = vmatprep.mubr.f32.mxu0 0.0
  %373 = vmatmul.mubr.f32.gmra.mrb[0].mxu0 %v155
  %v374 = vpop.f32.mrb[0].mxu0
  %v375 = vadd.f32 %v65, %v374
  %v376 = vpop.f32.mrb[0].mxu0
  %377 = vmatprep.mubr.f32.mxu0 0.0
  %378 = vmatmul.mubr.f32.gmra.mrb[0].mxu0 %v158
  %v379 = vpop.f32.mrb[0].mxu0
  %v380 = vadd.f32 %v65, %v379
  %v381 = vpop.f32.mrb[0].mxu0
  %382 = vmatprep.mubr.f32.mxu0 0.0
  %383 = vmatmul.mubr.f32.gmra.mrb[0].mxu0 %v161
  %v384 = vpop.f32.mrb[0].mxu0
  %v385 = vadd.f32 %v65, %v384
  %v386 = vpop.f32.mrb[0].mxu0
  %387 = vdwg.mxu0
  %v388 = vmax.f32 %v230, 0.0
  %v389 = vmax.f32 %v235, 0.0
  %v390 = vmax.f32 %v240, 0.0
  %v391 = vmax.f32 %v245, 0.0
  %v392 = vmax.f32 %v250, 0.0
  %v393 = vmax.f32 %v255, 0.0
  %v394 = vmax.f32 %v260, 0.0
  %v395 = vmax.f32 %v265, 0.0
  %v396 = vmax.f32 %v270, 0.0
  %v397 = vmax.f32 %v275, 0.0
  %v398 = vmax.f32 %v280, 0.0
  %v399 = vmax.f32 %v285, 0.0
  %v400 = vmax.f32 %v290, 0.0
  %v401 = vmax.f32 %v295, 0.0
  %v402 = vmax.f32 %v300, 0.0
  %v403 = vmax.f32 %v305, 0.0
  %v404 = vmax.f32 %v310, 0.0
  %v405 = vmax.f32 %v315, 0.0
  %v406 = vmax.f32 %v320, 0.0
  %v407 = vmax.f32 %v325, 0.0
  %v408 = vmax.f32 %v330, 0.0
  %v409 = vmax.f32 %v335, 0.0
  %v410 = vmax.f32 %v340, 0.0
  %v411 = vmax.f32 %v345, 0.0
  %v412 = vmax.f32 %v350, 0.0
  %v413 = vmax.f32 %v355, 0.0
  %v414 = vmax.f32 %v360, 0.0
  %v415 = vmax.f32 %v365, 0.0
  %v416 = vmax.f32 %v370, 0.0
  %v417 = vmax.f32 %v375, 0.0
  %v418 = vmax.f32 %v380, 0.0
  %v419 = vmax.f32 %v385, 0.0
  %v420 = vlaneseq
  %v421 = vshrl.u32 %v420, 7
  %v422 = vsub.s32 0, %v421
  %v423 = vrot.slane %v58, %v422
  %vm424 = vcmask 261120
  %v426 = vsel %vm424, %v388, 0
  %v429 = vsel %vm424, %v389, 0
  %v432 = vsel %vm424, %v390, 0
  %v435 = vsel %vm424, %v391, 0
  %v438 = vsel %vm424, %v392, 0
  %v441 = vsel %vm424, %v393, 0
  %v444 = vsel %vm424, %v394, 0
  %v447 = vsel %vm424, %v395, 0
  %v450 = vsel %vm424, %v396, 0
  %v453 = vsel %vm424, %v397, 0
  %v456 = vsel %vm424, %v398, 0
  %v459 = vsel %vm424, %v399, 0
  %v462 = vsel %vm424, %v400, 0
  %v465 = vsel %vm424, %v401, 0
  %v468 = vsel %vm424, %v402, 0
  %v471 = vsel %vm424, %v403, 0
  %v474 = vsel %vm424, %v404, 0
  %v477 = vsel %vm424, %v405, 0
  %v480 = vsel %vm424, %v406, 0
  %v483 = vsel %vm424, %v407, 0
  %v486 = vsel %vm424, %v408, 0
  %v489 = vsel %vm424, %v409, 0
  %v492 = vsel %vm424, %v410, 0
  %v495 = vsel %vm424, %v411, 0
  %v498 = vsel %vm424, %v412, 0
  %v501 = vsel %vm424, %v413, 0
  %v504 = vsel %vm424, %v414, 0
  %v507 = vsel %vm424, %v415, 0
  %v510 = vsel %vm424, %v416, 0
  %v513 = vsel %vm424, %v417, 0
  %v516 = vsel %vm424, %v418, 0
  %v519 = vsel %vm424, %v419, 0
  %521 = vmatprep.subr.mxu0 0.0
  %522 = vmatpush1.msra.mxu0 %v54
  %523 = vmatprep.subr.mxu0 0.0
  %524 = vmatpush1.msra.mxu0 %v55
  %525 = vmatprep.subr.mxu0 0.0
  %526 = vmatpush1.msra.mxu0 %v56
  %527 = vmatprep.subr.mxu0 0.0
  %528 = vmatpush1.msra.mxu0 %v57
  %529 = vmatprep.subr.mxu0 0.0
  %530 = vmatpush1.msra.mxu0 0.0
  %531 = vmatprep.subr.mxu0 0.0
  %532 = vmatpush1.msra.mxu0 0.0
  %533 = vmatprep.subr.mxu0 0.0
  %534 = vmatpush1.msra.mxu0 0.0
  %535 = vmatprep.subr.mxu0 0.0
  %536 = vmatpush1.msra.mxu0 0.0
  %537 = vmatprep.subr.mxu0 0.0
  %538 = vmatpush1.msra.mxu0 0.0
  %539 = vmatprep.subr.mxu0 0.0
  %540 = vmatpush1.msra.mxu0 0.0
  %541 = vmatprep.subr.mxu0 0.0
  %542 = vmatpush1.msra.mxu0 0.0
  %543 = vmatprep.subr.mxu0 0.0
  %544 = vmatpush1.msra.mxu0 0.0
  %545 = vmatprep.subr.mxu0 0.0
  %546 = vmatpush1.msra.mxu0 0.0
  %547 = vmatprep.subr.mxu0 0.0
  %548 = vmatpush1.msra.mxu0 0.0
  %549 = vmatprep.subr.mxu0 0.0
  %550 = vmatpush1.msra.mxu0 0.0
  %551 = vmatprep.subr.mxu0 0.0
  %552 = vmatpush1.msra.mxu0 0.0
  %553 = vmatprep.subr.mxu0 0.0
  %554 = vmatpush1.msra.mxu0 0.0
  %555 = vmatprep.subr.mxu0 0.0
  %556 = vmatpush1.msra.mxu0 0.0
  %557 = vmatprep.subr.mxu0 0.0
  %558 = vmatpush1.msra.mxu0 0.0
  %559 = vmatprep.subr.mxu0 0.0
  %560 = vmatpush1.msra.mxu0 0.0
  %561 = vmatprep.subr.mxu0 0.0
  %562 = vmatpush1.msra.mxu0 0.0
  %563 = vmatprep.subr.mxu0 0.0
  %564 = vmatpush1.msra.mxu0 0.0
  %565 = vmatprep.subr.mxu0 0.0
  %566 = vmatpush1.msra.mxu0 0.0
  %567 = vmatprep.subr.mxu0 0.0
  %568 = vmatpush1.msra.mxu0 0.0
  %569 = vmatprep.subr.mxu0 0.0
  %570 = vmatpush1.msra.mxu0 0.0
  %571 = vmatprep.subr.mxu0 0.0
  %572 = vmatpush1.msra.mxu0 0.0
  %573 = vmatprep.subr.mxu0 0.0
  %574 = vmatpush1.msra.mxu0 0.0
  %575 = vmatprep.subr.mxu0 0.0
  %576 = vmatpush1.msra.mxu0 0.0
  %577 = vmatprep.subr.mxu0 0.0
  %578 = vmatpush1.msra.mxu0 0.0
  %579 = vmatprep.subr.mxu0 0.0
  %580 = vmatpush1.msra.mxu0 0.0
  %581 = vmatprep.subr.mxu0 0.0
  %582 = vmatpush1.msra.mxu0 0.0
  %583 = vmatprep.subr.mxu0 0.0
  %584 = vmatpush1.msra.mxu0 0.0
  %585 = vmatprep.mubr.f32.mxu0 0.0
  %586 = vmatmul.mubr.f32.gmra.mrb[0].mxu0 %v426
  %v587 = vpop.f32.mrb[0].mxu0
  %v588 = vadd.f32 %v423, %v587
  %v589 = vpop.f32.mrb[0].mxu0
  %590 = vmatprep.mubr.f32.mxu0 0.0
  %591 = vmatmul.mubr.f32.gmra.mrb[0].mxu0 %v429
  %v592 = vpop.f32.mrb[0].mxu0
  %v593 = vadd.f32 %v423, %v592
  %v594 = vpop.f32.mrb[0].mxu0
  %595 = vmatprep.mubr.f32.mxu0 0.0
  %596 = vmatmul.mubr.f32.gmra.mrb[0].mxu0 %v432
  %v597 = vpop.f32.mrb[0].mxu0
  %v598 = vadd.f32 %v423, %v597
  %v599 = vpop.f32.mrb[0].mxu0
  %600 = vmatprep.mubr.f32.mxu0 0.0
  %601 = vmatmul.mubr.f32.gmra.mrb[0].mxu0 %v435
  %v602 = vpop.f32.mrb[0].mxu0
  %v603 = vadd.f32 %v423, %v602
  %v604 = vpop.f32.mrb[0].mxu0
  %605 = vmatprep.mubr.f32.mxu0 0.0
  %606 = vmatmul.mubr.f32.gmra.mrb[0].mxu0 %v438
  %v607 = vpop.f32.mrb[0].mxu0
  %v608 = vadd.f32 %v423, %v607
  %v609 = vpop.f32.mrb[0].mxu0
  %610 = vmatprep.mubr.f32.mxu0 0.0
  %611 = vmatmul.mubr.f32.gmra.mrb[0].mxu0 %v441
  %v612 = vpop.f32.mrb[0].mxu0
  %v613 = vadd.f32 %v423, %v612
  %v614 = vpop.f32.mrb[0].mxu0
  %615 = vmatprep.mubr.f32.mxu0 0.0
  %616 = vmatmul.mubr.f32.gmra.mrb[0].mxu0 %v444
  %v617 = vpop.f32.mrb[0].mxu0
  %v618 = vadd.f32 %v423, %v617
  %v619 = vpop.f32.mrb[0].mxu0
  %620 = vmatprep.mubr.f32.mxu0 0.0
  %621 = vmatmul.mubr.f32.gmra.mrb[0].mxu0 %v447
  %v622 = vpop.f32.mrb[0].mxu0
  %v623 = vadd.f32 %v423, %v622
  %v624 = vpop.f32.mrb[0].mxu0
  %625 = vmatprep.mubr.f32.mxu0 0.0
  %626 = vmatmul.mubr.f32.gmra.mrb[0].mxu0 %v450
  %v627 = vpop.f32.mrb[0].mxu0
  %v628 = vadd.f32 %v423, %v627
  %v629 = vpop.f32.mrb[0].mxu0
  %630 = vmatprep.mubr.f32.mxu0 0.0
  %631 = vmatmul.mubr.f32.gmra.mrb[0].mxu0 %v453
  %v632 = vpop.f32.mrb[0].mxu0
  %v633 = vadd.f32 %v423, %v632
  %v634 = vpop.f32.mrb[0].mxu0
  %635 = vmatprep.mubr.f32.mxu0 0.0
  %636 = vmatmul.mubr.f32.gmra.mrb[0].mxu0 %v456
  %v637 = vpop.f32.mrb[0].mxu0
  %v638 = vadd.f32 %v423, %v637
  %v639 = vpop.f32.mrb[0].mxu0
  %640 = vmatprep.mubr.f32.mxu0 0.0
  %641 = vmatmul.mubr.f32.gmra.mrb[0].mxu0 %v459
  %v642 = vpop.f32.mrb[0].mxu0
  %v643 = vadd.f32 %v423, %v642
  %v644 = vpop.f32.mrb[0].mxu0
  %645 = vmatprep.mubr.f32.mxu0 0.0
  %646 = vmatmul.mubr.f32.gmra.mrb[0].mxu0 %v462
  %v647 = vpop.f32.mrb[0].mxu0
  %v648 = vadd.f32 %v423, %v647
  %v649 = vpop.f32.mrb[0].mxu0
  %650 = vmatprep.mubr.f32.mxu0 0.0
  %651 = vmatmul.mubr.f32.gmra.mrb[0].mxu0 %v465
  %v652 = vpop.f32.mrb[0].mxu0
  %v653 = vadd.f32 %v423, %v652
  %v654 = vpop.f32.mrb[0].mxu0
  %655 = vmatprep.mubr.f32.mxu0 0.0
  %656 = vmatmul.mubr.f32.gmra.mrb[0].mxu0 %v468
  %v657 = vpop.f32.mrb[0].mxu0
  %v658 = vadd.f32 %v423, %v657
  %v659 = vpop.f32.mrb[0].mxu0
  %660 = vmatprep.mubr.f32.mxu0 0.0
  %661 = vmatmul.mubr.f32.gmra.mrb[0].mxu0 %v471
  %v662 = vpop.f32.mrb[0].mxu0
  %v663 = vadd.f32 %v423, %v662
  %v664 = vpop.f32.mrb[0].mxu0
  %665 = vmatprep.mubr.f32.mxu0 0.0
  %666 = vmatmul.mubr.f32.gmra.mrb[0].mxu0 %v474
  %v667 = vpop.f32.mrb[0].mxu0
  %v668 = vadd.f32 %v423, %v667
  %v669 = vpop.f32.mrb[0].mxu0
  %670 = vmatprep.mubr.f32.mxu0 0.0
  %671 = vmatmul.mubr.f32.gmra.mrb[0].mxu0 %v477
  %v672 = vpop.f32.mrb[0].mxu0
  %v673 = vadd.f32 %v423, %v672
  %v674 = vpop.f32.mrb[0].mxu0
  %675 = vmatprep.mubr.f32.mxu0 0.0
  %676 = vmatmul.mubr.f32.gmra.mrb[0].mxu0 %v480
  %v677 = vpop.f32.mrb[0].mxu0
  %v678 = vadd.f32 %v423, %v677
  %v679 = vpop.f32.mrb[0].mxu0
  %680 = vmatprep.mubr.f32.mxu0 0.0
  %681 = vmatmul.mubr.f32.gmra.mrb[0].mxu0 %v483
  %v682 = vpop.f32.mrb[0].mxu0
  %v683 = vadd.f32 %v423, %v682
  %v684 = vpop.f32.mrb[0].mxu0
  %685 = vmatprep.mubr.f32.mxu0 0.0
  %686 = vmatmul.mubr.f32.gmra.mrb[0].mxu0 %v486
  %v687 = vpop.f32.mrb[0].mxu0
  %v688 = vadd.f32 %v423, %v687
  %v689 = vpop.f32.mrb[0].mxu0
  %690 = vmatprep.mubr.f32.mxu0 0.0
  %691 = vmatmul.mubr.f32.gmra.mrb[0].mxu0 %v489
  %v692 = vpop.f32.mrb[0].mxu0
  %v693 = vadd.f32 %v423, %v692
  %v694 = vpop.f32.mrb[0].mxu0
  %695 = vmatprep.mubr.f32.mxu0 0.0
  %696 = vmatmul.mubr.f32.gmra.mrb[0].mxu0 %v492
  %v697 = vpop.f32.mrb[0].mxu0
  %v698 = vadd.f32 %v423, %v697
  %v699 = vpop.f32.mrb[0].mxu0
  %700 = vmatprep.mubr.f32.mxu0 0.0
  %701 = vmatmul.mubr.f32.gmra.mrb[0].mxu0 %v495
  %v702 = vpop.f32.mrb[0].mxu0
  %v703 = vadd.f32 %v423, %v702
  %v704 = vpop.f32.mrb[0].mxu0
  %705 = vmatprep.mubr.f32.mxu0 0.0
  %706 = vmatmul.mubr.f32.gmra.mrb[0].mxu0 %v498
  %v707 = vpop.f32.mrb[0].mxu0
  %v708 = vadd.f32 %v423, %v707
  %v709 = vpop.f32.mrb[0].mxu0
  %710 = vmatprep.mubr.f32.mxu0 0.0
  %711 = vmatmul.mubr.f32.gmra.mrb[0].mxu0 %v501
  %v712 = vpop.f32.mrb[0].mxu0
  %v713 = vadd.f32 %v423, %v712
  %v714 = vpop.f32.mrb[0].mxu0
  %715 = vmatprep.mubr.f32.mxu0 0.0
  %716 = vmatmul.mubr.f32.gmra.mrb[0].mxu0 %v504
  %v717 = vpop.f32.mrb[0].mxu0
  %v718 = vadd.f32 %v423, %v717
  %v719 = vpop.f32.mrb[0].mxu0
  %720 = vmatprep.mubr.f32.mxu0 0.0
  %721 = vmatmul.mubr.f32.gmra.mrb[0].mxu0 %v507
  %v722 = vpop.f32.mrb[0].mxu0
  %v723 = vadd.f32 %v423, %v722
  %v724 = vpop.f32.mrb[0].mxu0
  %725 = vmatprep.mubr.f32.mxu0 0.0
  %726 = vmatmul.mubr.f32.gmra.mrb[0].mxu0 %v510
  %v727 = vpop.f32.mrb[0].mxu0
  %v728 = vadd.f32 %v423, %v727
  %v729 = vpop.f32.mrb[0].mxu0
  %730 = vmatprep.mubr.f32.mxu0 0.0
  %731 = vmatmul.mubr.f32.gmra.mrb[0].mxu0 %v513
  %v732 = vpop.f32.mrb[0].mxu0
  %v733 = vadd.f32 %v423, %v732
  %v734 = vpop.f32.mrb[0].mxu0
  %735 = vmatprep.mubr.f32.mxu0 0.0
  %736 = vmatmul.mubr.f32.gmra.mrb[0].mxu0 %v516
  %v737 = vpop.f32.mrb[0].mxu0
  %v738 = vadd.f32 %v423, %v737
  %v739 = vpop.f32.mrb[0].mxu0
  %740 = vmatprep.mubr.f32.mxu0 0.0
  %741 = vmatmul.mubr.f32.gmra.mrb[0].mxu0 %v519
  %v742 = vpop.f32.mrb[0].mxu0
  %v743 = vadd.f32 %v423, %v742
  %v744 = vpop.f32.mrb[0].mxu0
  %745 = vdwg.mxu0
  %v746 = vmax.f32 %v588, 0.0
  %v747 = vmax.f32 %v593, 0.0
  %v748 = vmax.f32 %v598, 0.0
  %v749 = vmax.f32 %v603, 0.0
  %v750 = vmax.f32 %v608, 0.0
  %v751 = vmax.f32 %v613, 0.0
  %v752 = vmax.f32 %v618, 0.0
  %v753 = vmax.f32 %v623, 0.0
  %v754 = vmax.f32 %v628, 0.0
  %v755 = vmax.f32 %v633, 0.0
  %v756 = vmax.f32 %v638, 0.0
  %v757 = vmax.f32 %v643, 0.0
  %v758 = vmax.f32 %v648, 0.0
  %v759 = vmax.f32 %v653, 0.0
  %v760 = vmax.f32 %v658, 0.0
  %v761 = vmax.f32 %v663, 0.0
  %v762 = vmax.f32 %v668, 0.0
  %v763 = vmax.f32 %v673, 0.0
  %v764 = vmax.f32 %v678, 0.0
  %v765 = vmax.f32 %v683, 0.0
  %v766 = vmax.f32 %v688, 0.0
  %v767 = vmax.f32 %v693, 0.0
  %v768 = vmax.f32 %v698, 0.0
  %v769 = vmax.f32 %v703, 0.0
  %v770 = vmax.f32 %v708, 0.0
  %v771 = vmax.f32 %v713, 0.0
  %v772 = vmax.f32 %v718, 0.0
  %v773 = vmax.f32 %v723, 0.0
  %v774 = vmax.f32 %v728, 0.0
  %v775 = vmax.f32 %v733, 0.0
  %v776 = vmax.f32 %v738, 0.0
  %v777 = vmax.f32 %v743, 0.0
  %v778 = vlaneseq
  %v779 = vshrl.u32 %v778, 7
  %v780 = vsub.s32 0, %v779
  %v781 = vrot.slane %v61, %v780
  %vm782 = vcmask 130048
  %v784 = vsel %vm782, %v746, 0
  %v787 = vsel %vm782, %v747, 0
  %v790 = vsel %vm782, %v748, 0
  %v793 = vsel %vm782, %v749, 0
  %v796 = vsel %vm782, %v750, 0
  %v799 = vsel %vm782, %v751, 0
  %v802 = vsel %vm782, %v752, 0
  %v805 = vsel %vm782, %v753, 0
  %v808 = vsel %vm782, %v754, 0
  %v811 = vsel %vm782, %v755, 0
  %v814 = vsel %vm782, %v756, 0
  %v817 = vsel %vm782, %v757, 0
  %v820 = vsel %vm782, %v758, 0
  %v823 = vsel %vm782, %v759, 0
  %v826 = vsel %vm782, %v760, 0
  %v829 = vsel %vm782, %v761, 0
  %v832 = vsel %vm782, %v762, 0
  %v835 = vsel %vm782, %v763, 0
  %v838 = vsel %vm782, %v764, 0
  %v841 = vsel %vm782, %v765, 0
  %v844 = vsel %vm782, %v766, 0
  %v847 = vsel %vm782, %v767, 0
  %v850 = vsel %vm782, %v768, 0
  %v853 = vsel %vm782, %v769, 0
  %v856 = vsel %vm782, %v770, 0
  %v859 = vsel %vm782, %v771, 0
  %v862 = vsel %vm782, %v772, 0
  %v865 = vsel %vm782, %v773, 0
  %v868 = vsel %vm782, %v774, 0
  %v871 = vsel %vm782, %v775, 0
  %v874 = vsel %vm782, %v776, 0
  %v877 = vsel %vm782, %v777, 0
  %879 = vmatprep.subr.mxu0 0.0
  %880 = vmatpush1.msra.mxu0 %v59
  %881 = vmatprep.subr.mxu0 0.0
  %882 = vmatpush1.msra.mxu0 %v60
  %883 = vmatprep.subr.mxu0 0.0
  %884 = vmatpush1.msra.mxu0 0.0
  %885 = vmatprep.subr.mxu0 0.0
  %886 = vmatpush1.msra.mxu0 0.0
  %887 = vmatprep.subr.mxu0 0.0
  %888 = vmatpush1.msra.mxu0 0.0
  %889 = vmatprep.subr.mxu0 0.0
  %890 = vmatpush1.msra.mxu0 0.0
  %891 = vmatprep.subr.mxu0 0.0
  %892 = vmatpush1.msra.mxu0 0.0
  %893 = vmatprep.subr.mxu0 0.0
  %894 = vmatpush1.msra.mxu0 0.0
  %895 = vmatprep.subr.mxu0 0.0
  %896 = vmatpush1.msra.mxu0 0.0
  %897 = vmatprep.subr.mxu0 0.0
  %898 = vmatpush1.msra.mxu0 0.0
  %899 = vmatprep.subr.mxu0 0.0
  %900 = vmatpush1.msra.mxu0 0.0
  %901 = vmatprep.subr.mxu0 0.0
  %902 = vmatpush1.msra.mxu0 0.0
  %903 = vmatprep.subr.mxu0 0.0
  %904 = vmatpush1.msra.mxu0 0.0
  %905 = vmatprep.subr.mxu0 0.0
  %906 = vmatpush1.msra.mxu0 0.0
  %907 = vmatprep.subr.mxu0 0.0
  %908 = vmatpush1.msra.mxu0 0.0
  %909 = vmatprep.subr.mxu0 0.0
  %910 = vmatpush1.msra.mxu0 0.0
  %911 = vmatprep.subr.mxu0 0.0
  %912 = vmatpush1.msra.mxu0 0.0
  %913 = vmatprep.subr.mxu0 0.0
  %914 = vmatpush1.msra.mxu0 0.0
  %915 = vmatprep.subr.mxu0 0.0
  %916 = vmatpush1.msra.mxu0 0.0
  %917 = vmatprep.subr.mxu0 0.0
  %918 = vmatpush1.msra.mxu0 0.0
  %919 = vmatprep.subr.mxu0 0.0
  %920 = vmatpush1.msra.mxu0 0.0
  %921 = vmatprep.subr.mxu0 0.0
  %922 = vmatpush1.msra.mxu0 0.0
  %923 = vmatprep.subr.mxu0 0.0
  %924 = vmatpush1.msra.mxu0 0.0
  %925 = vmatprep.subr.mxu0 0.0
  %926 = vmatpush1.msra.mxu0 0.0
  %927 = vmatprep.subr.mxu0 0.0
  %928 = vmatpush1.msra.mxu0 0.0
  %929 = vmatprep.subr.mxu0 0.0
  %930 = vmatpush1.msra.mxu0 0.0
  %931 = vmatprep.subr.mxu0 0.0
  %932 = vmatpush1.msra.mxu0 0.0
  %933 = vmatprep.subr.mxu0 0.0
  %934 = vmatpush1.msra.mxu0 0.0
  %935 = vmatprep.subr.mxu0 0.0
  %936 = vmatpush1.msra.mxu0 0.0
  %937 = vmatprep.subr.mxu0 0.0
  %938 = vmatpush1.msra.mxu0 0.0
  %939 = vmatprep.subr.mxu0 0.0
  %940 = vmatpush1.msra.mxu0 0.0
  %941 = vmatprep.subr.mxu0 0.0
  %942 = vmatpush1.msra.mxu0 0.0
  %943 = vmatprep.mubr.f32.mxu0 0.0
  %944 = vmatmul.mubr.f32.gmra.mrb[0].mxu0 %v784
  %v945 = vpop.f32.mrb[0].mxu0
  %v946 = vadd.f32 %v781, %v945
  %v947 = vpop.f32.mrb[0].mxu0
  %948 = vmatprep.mubr.f32.mxu0 0.0
  %949 = vmatmul.mubr.f32.gmra.mrb[0].mxu0 %v787
  %v950 = vpop.f32.mrb[0].mxu0
  %v951 = vadd.f32 %v781, %v950
  %v952 = vpop.f32.mrb[0].mxu0
  %953 = vmatprep.mubr.f32.mxu0 0.0
  %954 = vmatmul.mubr.f32.gmra.mrb[0].mxu0 %v790
  %v955 = vpop.f32.mrb[0].mxu0
  %v956 = vadd.f32 %v781, %v955
  %v957 = vpop.f32.mrb[0].mxu0
  %958 = vmatprep.mubr.f32.mxu0 0.0
  %959 = vmatmul.mubr.f32.gmra.mrb[0].mxu0 %v793
  %v960 = vpop.f32.mrb[0].mxu0
  %v961 = vadd.f32 %v781, %v960
  %v962 = vpop.f32.mrb[0].mxu0
  %963 = vmatprep.mubr.f32.mxu0 0.0
  %964 = vmatmul.mubr.f32.gmra.mrb[0].mxu0 %v796
  %v965 = vpop.f32.mrb[0].mxu0
  %v966 = vadd.f32 %v781, %v965
  %v967 = vpop.f32.mrb[0].mxu0
  %968 = vmatprep.mubr.f32.mxu0 0.0
  %969 = vmatmul.mubr.f32.gmra.mrb[0].mxu0 %v799
  %v970 = vpop.f32.mrb[0].mxu0
  %v971 = vadd.f32 %v781, %v970
  %v972 = vpop.f32.mrb[0].mxu0
  %973 = vmatprep.mubr.f32.mxu0 0.0
  %974 = vmatmul.mubr.f32.gmra.mrb[0].mxu0 %v802
  %v975 = vpop.f32.mrb[0].mxu0
  %v976 = vadd.f32 %v781, %v975
  %v977 = vpop.f32.mrb[0].mxu0
  %978 = vmatprep.mubr.f32.mxu0 0.0
  %979 = vmatmul.mubr.f32.gmra.mrb[0].mxu0 %v805
  %v980 = vpop.f32.mrb[0].mxu0
  %v981 = vadd.f32 %v781, %v980
  %v982 = vpop.f32.mrb[0].mxu0
  %983 = vmatprep.mubr.f32.mxu0 0.0
  %984 = vmatmul.mubr.f32.gmra.mrb[0].mxu0 %v808
  %v985 = vpop.f32.mrb[0].mxu0
  %v986 = vadd.f32 %v781, %v985
  %v987 = vpop.f32.mrb[0].mxu0
  %988 = vmatprep.mubr.f32.mxu0 0.0
  %989 = vmatmul.mubr.f32.gmra.mrb[0].mxu0 %v811
  %v990 = vpop.f32.mrb[0].mxu0
  %v991 = vadd.f32 %v781, %v990
  %v992 = vpop.f32.mrb[0].mxu0
  %993 = vmatprep.mubr.f32.mxu0 0.0
  %994 = vmatmul.mubr.f32.gmra.mrb[0].mxu0 %v814
  %v995 = vpop.f32.mrb[0].mxu0
  %v996 = vadd.f32 %v781, %v995
  %v997 = vpop.f32.mrb[0].mxu0
  %998 = vmatprep.mubr.f32.mxu0 0.0
  %999 = vmatmul.mubr.f32.gmra.mrb[0].mxu0 %v817
  %v1000 = vpop.f32.mrb[0].mxu0
  %v1001 = vadd.f32 %v781, %v1000
  %v1002 = vpop.f32.mrb[0].mxu0
  %1003 = vmatprep.mubr.f32.mxu0 0.0
  %1004 = vmatmul.mubr.f32.gmra.mrb[0].mxu0 %v820
  %v1005 = vpop.f32.mrb[0].mxu0
  %v1006 = vadd.f32 %v781, %v1005
  %v1007 = vpop.f32.mrb[0].mxu0
  %1008 = vmatprep.mubr.f32.mxu0 0.0
  %1009 = vmatmul.mubr.f32.gmra.mrb[0].mxu0 %v823
  %v1010 = vpop.f32.mrb[0].mxu0
  %v1011 = vadd.f32 %v781, %v1010
  %v1012 = vpop.f32.mrb[0].mxu0
  %1013 = vmatprep.mubr.f32.mxu0 0.0
  %1014 = vmatmul.mubr.f32.gmra.mrb[0].mxu0 %v826
  %v1015 = vpop.f32.mrb[0].mxu0
  %v1016 = vadd.f32 %v781, %v1015
  %v1017 = vpop.f32.mrb[0].mxu0
  %1018 = vmatprep.mubr.f32.mxu0 0.0
  %1019 = vmatmul.mubr.f32.gmra.mrb[0].mxu0 %v829
  %v1020 = vpop.f32.mrb[0].mxu0
  %v1021 = vadd.f32 %v781, %v1020
  %v1022 = vpop.f32.mrb[0].mxu0
  %1023 = vmatprep.mubr.f32.mxu0 0.0
  %1024 = vmatmul.mubr.f32.gmra.mrb[0].mxu0 %v832
  %v1025 = vpop.f32.mrb[0].mxu0
  %v1026 = vadd.f32 %v781, %v1025
  %v1027 = vpop.f32.mrb[0].mxu0
  %1028 = vmatprep.mubr.f32.mxu0 0.0
  %1029 = vmatmul.mubr.f32.gmra.mrb[0].mxu0 %v835
  %v1030 = vpop.f32.mrb[0].mxu0
  %v1031 = vadd.f32 %v781, %v1030
  %v1032 = vpop.f32.mrb[0].mxu0
  %1033 = vmatprep.mubr.f32.mxu0 0.0
  %1034 = vmatmul.mubr.f32.gmra.mrb[0].mxu0 %v838
  %v1035 = vpop.f32.mrb[0].mxu0
  %v1036 = vadd.f32 %v781, %v1035
  %v1037 = vpop.f32.mrb[0].mxu0
  %1038 = vmatprep.mubr.f32.mxu0 0.0
  %1039 = vmatmul.mubr.f32.gmra.mrb[0].mxu0 %v841
  %v1040 = vpop.f32.mrb[0].mxu0
  %v1041 = vadd.f32 %v781, %v1040
  %v1042 = vpop.f32.mrb[0].mxu0
  %1043 = vmatprep.mubr.f32.mxu0 0.0
  %1044 = vmatmul.mubr.f32.gmra.mrb[0].mxu0 %v844
  %v1045 = vpop.f32.mrb[0].mxu0
  %v1046 = vadd.f32 %v781, %v1045
  %v1047 = vpop.f32.mrb[0].mxu0
  %1048 = vmatprep.mubr.f32.mxu0 0.0
  %1049 = vmatmul.mubr.f32.gmra.mrb[0].mxu0 %v847
  %v1050 = vpop.f32.mrb[0].mxu0
  %v1051 = vadd.f32 %v781, %v1050
  %v1052 = vpop.f32.mrb[0].mxu0
  %1053 = vmatprep.mubr.f32.mxu0 0.0
  %1054 = vmatmul.mubr.f32.gmra.mrb[0].mxu0 %v850
  %v1055 = vpop.f32.mrb[0].mxu0
  %v1056 = vadd.f32 %v781, %v1055
  %v1057 = vpop.f32.mrb[0].mxu0
  %1058 = vmatprep.mubr.f32.mxu0 0.0
  %1059 = vmatmul.mubr.f32.gmra.mrb[0].mxu0 %v853
  %v1060 = vpop.f32.mrb[0].mxu0
  %v1061 = vadd.f32 %v781, %v1060
  %v1062 = vpop.f32.mrb[0].mxu0
  %1063 = vmatprep.mubr.f32.mxu0 0.0
  %1064 = vmatmul.mubr.f32.gmra.mrb[0].mxu0 %v856
  %v1065 = vpop.f32.mrb[0].mxu0
  %v1066 = vadd.f32 %v781, %v1065
  %v1067 = vpop.f32.mrb[0].mxu0
  %1068 = vmatprep.mubr.f32.mxu0 0.0
  %1069 = vmatmul.mubr.f32.gmra.mrb[0].mxu0 %v859
  %v1070 = vpop.f32.mrb[0].mxu0
  %v1071 = vadd.f32 %v781, %v1070
  %v1072 = vpop.f32.mrb[0].mxu0
  %1073 = vmatprep.mubr.f32.mxu0 0.0
  %1074 = vmatmul.mubr.f32.gmra.mrb[0].mxu0 %v862
  %v1075 = vpop.f32.mrb[0].mxu0
  %v1076 = vadd.f32 %v781, %v1075
  %v1077 = vpop.f32.mrb[0].mxu0
  %1078 = vmatprep.mubr.f32.mxu0 0.0
  %1079 = vmatmul.mubr.f32.gmra.mrb[0].mxu0 %v865
  %v1080 = vpop.f32.mrb[0].mxu0
  %v1081 = vadd.f32 %v781, %v1080
  %v1082 = vpop.f32.mrb[0].mxu0
  %1083 = vmatprep.mubr.f32.mxu0 0.0
  %1084 = vmatmul.mubr.f32.gmra.mrb[0].mxu0 %v868
  %v1085 = vpop.f32.mrb[0].mxu0
  %v1086 = vadd.f32 %v781, %v1085
  %v1087 = vpop.f32.mrb[0].mxu0
  %1088 = vmatprep.mubr.f32.mxu0 0.0
  %1089 = vmatmul.mubr.f32.gmra.mrb[0].mxu0 %v871
  %v1090 = vpop.f32.mrb[0].mxu0
  %v1091 = vadd.f32 %v781, %v1090
  %v1092 = vpop.f32.mrb[0].mxu0
  %1093 = vmatprep.mubr.f32.mxu0 0.0
  %1094 = vmatmul.mubr.f32.gmra.mrb[0].mxu0 %v874
  %v1095 = vpop.f32.mrb[0].mxu0
  %v1096 = vadd.f32 %v781, %v1095
  %v1097 = vpop.f32.mrb[0].mxu0
  %1098 = vmatprep.mubr.f32.mxu0 0.0
  %1099 = vmatmul.mubr.f32.gmra.mrb[0].mxu0 %v877
  %v1100 = vpop.f32.mrb[0].mxu0
  %v1101 = vadd.f32 %v781, %v1100
  %v1102 = vpop.f32.mrb[0].mxu0
  %1103 = vdwg.mxu0
  %vm1104 = vcmask 64512
  %1105 = vst.msk [vmem:[%s2] sm:$0xff] %vm1104, %v946
  %1106 = vst.msk [vmem:[%s2 + $0x8] sm:$0xff] %vm1104, %v951
  %1107 = vst.msk [vmem:[%s2 + $0x10] sm:$0xff] %vm1104, %v956
  %1108 = vst.msk [vmem:[%s2 + $0x18] sm:$0xff] %vm1104, %v961
  %1109 = vst.msk [vmem:[%s2 + $0x20] sm:$0xff] %vm1104, %v966
  %1110 = vst.msk [vmem:[%s2 + $0x28] sm:$0xff] %vm1104, %v971
  %1111 = vst.msk [vmem:[%s2 + $0x30] sm:$0xff] %vm1104, %v976
  %1112 = vst.msk [vmem:[%s2 + $0x38] sm:$0xff] %vm1104, %v981
  %1113 = vst.msk [vmem:[%s2 + $0x40] sm:$0xff] %vm1104, %v986
  %1114 = vst.msk [vmem:[%s2 + $0x48] sm:$0xff] %vm1104, %v991
  %1115 = vst.msk [vmem:[%s2 + $0x50] sm:$0xff] %vm1104, %v996
  %1116 = vst.msk [vmem:[%s2 + $0x58] sm:$0xff] %vm1104, %v1001
  %1117 = vst.msk [vmem:[%s2 + $0x60] sm:$0xff] %vm1104, %v1006
  %1118 = vst.msk [vmem:[%s2 + $0x68] sm:$0xff] %vm1104, %v1011
  %1119 = vst.msk [vmem:[%s2 + $0x70] sm:$0xff] %vm1104, %v1016
  %1120 = vst.msk [vmem:[%s2 + $0x78] sm:$0xff] %vm1104, %v1021
  %1121 = vst.msk [vmem:[%s2 + $0x80] sm:$0xff] %vm1104, %v1026
  %1122 = vst.msk [vmem:[%s2 + $0x88] sm:$0xff] %vm1104, %v1031
  %1123 = vst.msk [vmem:[%s2 + $0x90] sm:$0xff] %vm1104, %v1036
  %1124 = vst.msk [vmem:[%s2 + $0x98] sm:$0xff] %vm1104, %v1041
  %1125 = vst.msk [vmem:[%s2 + $0xa0] sm:$0xff] %vm1104, %v1046
  %1126 = vst.msk [vmem:[%s2 + $0xa8] sm:$0xff] %vm1104, %v1051
  %1127 = vst.msk [vmem:[%s2 + $0xb0] sm:$0xff] %vm1104, %v1056
  %1128 = vst.msk [vmem:[%s2 + $0xb8] sm:$0xff] %vm1104, %v1061
  %1129 = vst.msk [vmem:[%s2 + $0xc0] sm:$0xff] %vm1104, %v1066
  %1130 = vst.msk [vmem:[%s2 + $0xc8] sm:$0xff] %vm1104, %v1071
  %1131 = vst.msk [vmem:[%s2 + $0xd0] sm:$0xff] %vm1104, %v1076
  %1132 = vst.msk [vmem:[%s2 + $0xd8] sm:$0xff] %vm1104, %v1081
  %1133 = vst.msk [vmem:[%s2 + $0xe0] sm:$0xff] %vm1104, %v1086
  %1134 = vst.msk [vmem:[%s2 + $0xe8] sm:$0xff] %vm1104, %v1091
  %1135 = vst.msk [vmem:[%s2 + $0xf0] sm:$0xff] %vm1104, %v1096
  %1136 = vst.msk [vmem:[%s2 + $0xf8] sm:$0xff] %vm1104, %v1101
  %1169 = vrot.lane.b32.xlu0 %v946, 120
  %v1170 = vpop.permute.xlu0 %1169
  %1171 = vrot.lane.b32.xlu0 %v951, 120
  %v1172 = vpop.permute.xlu0 %1171
  %1173 = vrot.lane.b32.xlu0 %v956, 120
  %v1174 = vpop.permute.xlu0 %1173
  %1175 = vrot.lane.b32.xlu0 %v961, 120
  %v1176 = vpop.permute.xlu0 %1175
  %1177 = vrot.lane.b32.xlu0 %v966, 120
  %v1178 = vpop.permute.xlu0 %1177
  %1179 = vrot.lane.b32.xlu0 %v971, 120
  %v1180 = vpop.permute.xlu0 %1179
  %1181 = vrot.lane.b32.xlu0 %v976, 120
  %v1182 = vpop.permute.xlu0 %1181
  %1183 = vrot.lane.b32.xlu0 %v981, 120
  %v1184 = vpop.permute.xlu0 %1183
  %1185 = vrot.lane.b32.xlu0 %v986, 120
  %v1186 = vpop.permute.xlu0 %1185
  %1187 = vrot.lane.b32.xlu0 %v991, 120
  %v1188 = vpop.permute.xlu0 %1187
  %1189 = vrot.lane.b32.xlu0 %v996, 120
  %v1190 = vpop.permute.xlu0 %1189
  %1191 = vrot.lane.b32.xlu0 %v1001, 120
  %v1192 = vpop.permute.xlu0 %1191
  %1193 = vrot.lane.b32.xlu0 %v1006, 120
  %v1194 = vpop.permute.xlu0 %1193
  %1195 = vrot.lane.b32.xlu0 %v1011, 120
  %v1196 = vpop.permute.xlu0 %1195
  %1197 = vrot.lane.b32.xlu0 %v1016, 120
  %v1198 = vpop.permute.xlu0 %1197
  %1199 = vrot.lane.b32.xlu0 %v1021, 120
  %v1200 = vpop.permute.xlu0 %1199
  %1201 = vrot.lane.b32.xlu0 %v1026, 120
  %v1202 = vpop.permute.xlu0 %1201
  %1203 = vrot.lane.b32.xlu0 %v1031, 120
  %v1204 = vpop.permute.xlu0 %1203
  %1205 = vrot.lane.b32.xlu0 %v1036, 120
  %v1206 = vpop.permute.xlu0 %1205
  %1207 = vrot.lane.b32.xlu0 %v1041, 120
  %v1208 = vpop.permute.xlu0 %1207
  %1209 = vrot.lane.b32.xlu0 %v1046, 120
  %v1210 = vpop.permute.xlu0 %1209
  %1211 = vrot.lane.b32.xlu0 %v1051, 120
  %v1212 = vpop.permute.xlu0 %1211
  %1213 = vrot.lane.b32.xlu0 %v1056, 120
  %v1214 = vpop.permute.xlu0 %1213
  %1215 = vrot.lane.b32.xlu0 %v1061, 120
  %v1216 = vpop.permute.xlu0 %1215
  %1217 = vrot.lane.b32.xlu0 %v1066, 120
  %v1218 = vpop.permute.xlu0 %1217
  %1219 = vrot.lane.b32.xlu0 %v1071, 120
  %v1220 = vpop.permute.xlu0 %1219
  %1221 = vrot.lane.b32.xlu0 %v1076, 120
  %v1222 = vpop.permute.xlu0 %1221
  %1223 = vrot.lane.b32.xlu0 %v1081, 120
  %v1224 = vpop.permute.xlu0 %1223
  %1225 = vrot.lane.b32.xlu0 %v1086, 120
  %v1226 = vpop.permute.xlu0 %1225
  %1227 = vrot.lane.b32.xlu0 %v1091, 120
  %v1228 = vpop.permute.xlu0 %1227
  %1229 = vrot.lane.b32.xlu0 %v1096, 120
  %v1230 = vpop.permute.xlu0 %1229
  %1231 = vrot.lane.b32.xlu0 %v1101, 120
  %v1232 = vpop.permute.xlu0 %1231
  %1265 = vst.msk [vmem:[%s3] sm:$0xff] %vm1104, %v1170
  %1266 = vst.msk [vmem:[%s3 + $0x8] sm:$0xff] %vm1104, %v1172
  %1267 = vst.msk [vmem:[%s3 + $0x10] sm:$0xff] %vm1104, %v1174
  %1268 = vst.msk [vmem:[%s3 + $0x18] sm:$0xff] %vm1104, %v1176
  %1269 = vst.msk [vmem:[%s3 + $0x20] sm:$0xff] %vm1104, %v1178
  %1270 = vst.msk [vmem:[%s3 + $0x28] sm:$0xff] %vm1104, %v1180
  %1271 = vst.msk [vmem:[%s3 + $0x30] sm:$0xff] %vm1104, %v1182
  %1272 = vst.msk [vmem:[%s3 + $0x38] sm:$0xff] %vm1104, %v1184
  %1273 = vst.msk [vmem:[%s3 + $0x40] sm:$0xff] %vm1104, %v1186
  %1274 = vst.msk [vmem:[%s3 + $0x48] sm:$0xff] %vm1104, %v1188
  %1275 = vst.msk [vmem:[%s3 + $0x50] sm:$0xff] %vm1104, %v1190
  %1276 = vst.msk [vmem:[%s3 + $0x58] sm:$0xff] %vm1104, %v1192
  %1277 = vst.msk [vmem:[%s3 + $0x60] sm:$0xff] %vm1104, %v1194
  %1278 = vst.msk [vmem:[%s3 + $0x68] sm:$0xff] %vm1104, %v1196
  %1279 = vst.msk [vmem:[%s3 + $0x70] sm:$0xff] %vm1104, %v1198
  %1280 = vst.msk [vmem:[%s3 + $0x78] sm:$0xff] %vm1104, %v1200
  %1281 = vst.msk [vmem:[%s3 + $0x80] sm:$0xff] %vm1104, %v1202
  %1282 = vst.msk [vmem:[%s3 + $0x88] sm:$0xff] %vm1104, %v1204
  %1283 = vst.msk [vmem:[%s3 + $0x90] sm:$0xff] %vm1104, %v1206
  %1284 = vst.msk [vmem:[%s3 + $0x98] sm:$0xff] %vm1104, %v1208
  %1285 = vst.msk [vmem:[%s3 + $0xa0] sm:$0xff] %vm1104, %v1210
  %1286 = vst.msk [vmem:[%s3 + $0xa8] sm:$0xff] %vm1104, %v1212
  %1287 = vst.msk [vmem:[%s3 + $0xb0] sm:$0xff] %vm1104, %v1214
  %1288 = vst.msk [vmem:[%s3 + $0xb8] sm:$0xff] %vm1104, %v1216
  %1289 = vst.msk [vmem:[%s3 + $0xc0] sm:$0xff] %vm1104, %v1218
  %1290 = vst.msk [vmem:[%s3 + $0xc8] sm:$0xff] %vm1104, %v1220
  %1291 = vst.msk [vmem:[%s3 + $0xd0] sm:$0xff] %vm1104, %v1222
  %1292 = vst.msk [vmem:[%s3 + $0xd8] sm:$0xff] %vm1104, %v1224
  %1293 = vst.msk [vmem:[%s3 + $0xe0] sm:$0xff] %vm1104, %v1226
  %1294 = vst.msk [vmem:[%s3 + $0xe8] sm:$0xff] %vm1104, %v1228
  %1295 = vst.msk [vmem:[%s3 + $0xf0] sm:$0xff] %vm1104, %v1230
  %1296 = vst.msk [vmem:[%s3 + $0xf8] sm:$0xff] %vm1104, %v1232
  // Predicated region
  $region10: #{encoder_forward.1} parent=0 // pred_check
    _
  $region11: #{encoder_forward.1} parent=0 // pred_check_branch
    %1298 = sbr.rel (0) target = $region13
  $region12: #{encoder_forward.1} parent=0 // pred_region
    _
  $region13: #{encoder_forward.1} parent=0 // pred_fallthru
    _
  // Predicated region
  $region14: #{encoder_forward.1} parent=0 // pred_check
    _
  $region15: #{encoder_forward.1} parent=0 // pred_check_branch
    %1300 = sbr.rel (0) target = $region17
  $region16: #{encoder_forward.1} parent=0 // pred_region
    _
  $region17: #{encoder_forward.1} parent=0 // pred_fallthru
    _
  // Predicated region
  $region18: #{encoder_forward.1} parent=0 // pred_check
    _
  $region19: #{encoder_forward.1} parent=0 // pred_check_branch
    %1302 = sbr.rel (0) target = $region21
  $region20: #{encoder_forward.1} parent=0 // pred_region
    _
  $region21: #{encoder_forward.1} parent=0 // pred_fallthru
    _
  // Predicated region
  $region22: #{encoder_forward.1} parent=0 // pred_check
    _
  $region23: #{encoder_forward.1} parent=0 // pred_check_branch
    %1304 = sbr.rel (0) target = $region25
  $region24: #{encoder_forward.1} parent=0 // pred_region
    _
  $region25: #{encoder_forward.1} parent=0 // pred_fallthru
    _

</llo_original>
